<compile_context>
chip_gen: v7x
topology: tpu7x:2x2x1
jax: 0.10.0
libtpu: 0.0.40
codegen_flags: <defaults>
</compile_context>

<pallas_src>
import functools

import jax
import jax.numpy as jnp
from jax.experimental import pallas as pl
from jax.experimental.pallas import tpu as pltpu


def _make_conv1x1_gelu_kernel(plan, C_in, P, dtype):
    """plan[p] = flat spatial index into x_flat for output pixel p, or None if
    that output pixel only ever sees zero padding (all static, trace-time)."""

    def kernel(x_ref, w_ref, b_ref, o_ref):
        # x_ref: (C_in, H*W)   w_ref: (C_out, C_in)   b_ref: (C_out, 1)
        # o_ref: (C_out, P)    with P = H_out * W_out
        #
        # Build the gathered, zero-padded pixel matrix (C_in, P) from static
        # slices of the full input resident in VMEM (no XLA gather/mask ops).
        pieces = []
        zero_run = 0
        for p in range(P):
            q = plan[p]
            if q is None:
                zero_run += 1
                continue
            if zero_run:
                pieces.append(jnp.zeros((C_in, zero_run), dtype))
                zero_run = 0
            pieces.append(x_ref[:, q:q + 1])          # static (C_in, 1) slice
        if zero_run:
            pieces.append(jnp.zeros((C_in, zero_run), dtype))
        g = jnp.concatenate(pieces, axis=1)            # (C_in, P)

        # 1x1 conv == channel matmul, computed C_out-major so the output is
        # already in NCHW element order.
        v1 = jnp.dot(w_ref[...], g, preferred_element_type=jnp.float32)
        v1 = v1 + b_ref[...]                           # lane-broadcast bias add

        # tanh-approx GELU, simplified chain:
        #   0.5 * v1 * (1 + tanh(0.7978845608 * (v1 + 0.044715 * v1^3)))
        t = v1 * v1
        inner = v1 * (1.0 + 0.044715 * t)
        o_ref[...] = (0.5 * v1) * (1.0 + jnp.tanh(0.7978845608028654 * inner))

    return kernel


@functools.partial(jax.jit, static_argnames=("stride", "padding"))
def conv1x1_gelu(x_nchw, weight, bias, *, stride, padding):
    """x_nchw: (1, C_in, H, W); weight: (C_out, C_in, 1, 1); bias: (C_out,)."""
    N, C_in, H, W = x_nchw.shape
    C_out = weight.shape[0]
    H_out = (H + 2 * padding - 1) // stride + 1
    W_out = (W + 2 * padding - 1) // stride + 1
    P = H_out * W_out
    assert N == 1  # module spec is batch 1; a real batch would add a 'parallel' grid axis

    # Static gather plan (Python ints resolved at trace time).
    plan = []
    for oh in range(H_out):
        ih = oh * stride - padding
        for ow in range(W_out):
            iw = ow * stride - padding
            plan.append(ih * W + iw if (0 <= ih < H and 0 <= iw < W) else None)

    # Contiguous (free) reshapes only — no gather / mask / transpose in XLA.
    x_flat = x_nchw.reshape(C_in, H * W)     # (21, 1645) ~138 KB, fits VMEM easily
    w_mat = weight.reshape(C_out, C_in)      # (54, 21)
    b_mat = bias.reshape(C_out, 1)           # (54, 1)

    kernel = _make_conv1x1_gelu_kernel(plan, C_in, P, x_flat.dtype)

    out = pl.pallas_call(
        kernel,
        out_shape=jax.ShapeDtypeStruct((C_out, P), jnp.float32),
        grid=(1,),
        in_specs=[
            pl.BlockSpec((C_in, H * W), lambda i: (0, 0)),
            pl.BlockSpec((C_out, C_in), lambda i: (0, 0)),
            pl.BlockSpec((C_out, 1), lambda i: (0, 0)),
        ],
        out_specs=pl.BlockSpec((C_out, P), lambda i: (0, 0)),
        compiler_params=pltpu.CompilerParams(dimension_semantics=("arbitrary",)),
    )(x_flat, w_mat, b_mat)

    # (C_out, P) is already C_out-major -> NCHW reshape is contiguous (free).
    return out.reshape(N, C_out, H_out, W_out)


if __name__ == "__main__":
    key = jax.random.PRNGKey(0)
    k_x, k_w, k_b = jax.random.split(key, 3)

    # Input shape from the PyTorch script: (1, 21, 47, 35), NCHW.
    x = jax.random.normal(k_x, (1, 21, 47, 35), dtype=jnp.float32)

    # Deterministic Conv2d(21, 54, 1) parameter init (PyTorch-style uniform scale).
    fan_in = 21 * 1 * 1
    bound = 1.0 / (fan_in ** 0.5)
    weight = jax.random.uniform(k_w, (54, 21, 1, 1), jnp.float32, -bound, bound)
    bias = jax.random.uniform(k_b, (54,), jnp.float32, -bound, bound)

    out = conv1x1_gelu(x, weight, bias, stride=17, padding=15)
    out = jax.block_until_ready(out)
    assert out.shape == (1, 54, 5, 4), out.shape

    # Pure-JAX reference (same math, no Pallas).
    ref_conv = jax.lax.conv_general_dilated(
        x, weight, window_strides=(17, 17), padding=[(15, 15), (15, 15)],
        dimension_numbers=("NCHW", "OIHW", "NCHW")) + bias[None, :, None, None]
    ref = (ref_conv * 0.5) * (jnp.tanh(
        (ref_conv + 0.044715 * ref_conv ** 3) * 0.7978845608028654) + 1.0)
    assert jnp.allclose(out, ref, atol=1e-5, rtol=1e-5)

    print("KERNEL_OK")
</pallas_src>

<mosaic_0001>
module attributes {stable_mosaic.version = 11 : i64} {
  func.func @kernel(%arg0: i32, %arg1: memref<21x1645xf32, #tpu.memory_space<vmem>>, %arg2: memref<54x21xf32, #tpu.memory_space<vmem>>, %arg3: memref<54x1xf32, #tpu.memory_space<vmem>>, %arg4: memref<54x20xf32, #tpu.memory_space<vmem>>) attributes {dimension_semantics = [#tpu.dimension_semantics<arbitrary>], iteration_bounds = array<i64: 1>, scalar_prefetch = 0 : i64, scratch_operands = 0 : i64, tpu.core_type = #tpu.core_type<tc>, window_params = [{pipeline_mode = #tpu.pipeline_mode<synchronous>, transform_indices = @transform_0, window_bounds = array<i64: 21, 1645>}, {pipeline_mode = #tpu.pipeline_mode<synchronous>, transform_indices = @transform_1, window_bounds = array<i64: 54, 21>}, {pipeline_mode = #tpu.pipeline_mode<synchronous>, transform_indices = @transform_2, window_bounds = array<i64: 54, 1>}, {pipeline_mode = #tpu.pipeline_mode<synchronous>, transform_indices = @transform_3, window_bounds = array<i64: 54, 20>}]} {
    %cst = arith.constant 0.000000e+00 : f32
    %0 = vector.broadcast %cst : f32 to vector<21x5xf32>
    %c0 = arith.constant 0 : index
    %c72 = arith.constant 72 : index
    %1 = vector.load %arg1[%c0, %c72] : memref<21x1645xf32, #tpu.memory_space<vmem>>, vector<21x1xf32>
    %c0_0 = arith.constant 0 : index
    %c89 = arith.constant 89 : index
    %2 = vector.load %arg1[%c0_0, %c89] : memref<21x1645xf32, #tpu.memory_space<vmem>>, vector<21x1xf32>
    %cst_1 = arith.constant 0.000000e+00 : f32
    %3 = vector.broadcast %cst_1 : f32 to vector<21x2xf32>
    %c0_2 = arith.constant 0 : index
    %c667 = arith.constant 667 : index
    %4 = vector.load %arg1[%c0_2, %c667] : memref<21x1645xf32, #tpu.memory_space<vmem>>, vector<21x1xf32>
    %c0_3 = arith.constant 0 : index
    %c684 = arith.constant 684 : index
    %5 = vector.load %arg1[%c0_3, %c684] : memref<21x1645xf32, #tpu.memory_space<vmem>>, vector<21x1xf32>
    %cst_4 = arith.constant 0.000000e+00 : f32
    %6 = vector.broadcast %cst_4 : f32 to vector<21x2xf32>
    %c0_5 = arith.constant 0 : index
    %c1262 = arith.constant 1262 : index
    %7 = vector.load %arg1[%c0_5, %c1262] : memref<21x1645xf32, #tpu.memory_space<vmem>>, vector<21x1xf32>
    %c0_6 = arith.constant 0 : index
    %c1279 = arith.constant 1279 : index
    %8 = vector.load %arg1[%c0_6, %c1279] : memref<21x1645xf32, #tpu.memory_space<vmem>>, vector<21x1xf32>
    %cst_7 = arith.constant 0.000000e+00 : f32
    %9 = vector.broadcast %cst_7 : f32 to vector<21x5xf32>
    %10 = tpu.concatenate %0, %1, %2, %3, %4, %5, %6, %7, %8, %9 in 1 : vector<21x5xf32>, vector<21x1xf32>, vector<21x1xf32>, vector<21x2xf32>, vector<21x1xf32>, vector<21x1xf32>, vector<21x2xf32>, vector<21x1xf32>, vector<21x1xf32>, vector<21x5xf32> -> vector<21x20xf32>
    %c0_8 = arith.constant 0 : index
    %c0_9 = arith.constant 0 : index
    %11 = vector.load %arg2[%c0_8, %c0_9] : memref<54x21xf32, #tpu.memory_space<vmem>>, vector<54x21xf32>
    %cst_10 = arith.constant dense<0.000000e+00> : vector<54x20xf32>
    %12 = tpu.matmul %11, %10, %cst_10 {dimension_numbers = #tpu.dot_dimension_numbers<[1], [0], [0], [1], [0, 0, 1, 1], [], []>} : vector<54x21xf32>, vector<21x20xf32>, vector<54x20xf32> -> vector<54x20xf32>
    %c0_11 = arith.constant 0 : index
    %c0_12 = arith.constant 0 : index
    %13 = vector.load %arg3[%c0_11, %c0_12] : memref<54x1xf32, #tpu.memory_space<vmem>>, vector<54x1xf32>
    %14 = vector.broadcast %13 : vector<54x1xf32> to vector<54x20xf32>
    %15 = arith.addf %12, %14 : vector<54x20xf32>
    %16 = arith.mulf %15, %15 : vector<54x20xf32>
    %cst_13 = arith.constant 4.471500e-02 : f32
    %17 = vector.broadcast %cst_13 : f32 to vector<54x20xf32>
    %18 = arith.mulf %17, %16 : vector<54x20xf32>
    %cst_14 = arith.constant 1.000000e+00 : f32
    %19 = vector.broadcast %cst_14 : f32 to vector<54x20xf32>
    %20 = arith.addf %19, %18 : vector<54x20xf32>
    %21 = arith.mulf %15, %20 : vector<54x20xf32>
    %cst_15 = arith.constant 5.000000e-01 : f32
    %22 = vector.broadcast %cst_15 : f32 to vector<54x20xf32>
    %23 = arith.mulf %22, %15 : vector<54x20xf32>
    %cst_16 = arith.constant 0.797884583 : f32
    %24 = vector.broadcast %cst_16 : f32 to vector<54x20xf32>
    %25 = arith.mulf %24, %21 : vector<54x20xf32>
    %26 = math.tanh %25 : vector<54x20xf32>
    %cst_17 = arith.constant 1.000000e+00 : f32
    %27 = vector.broadcast %cst_17 : f32 to vector<54x20xf32>
    %28 = arith.addf %27, %26 : vector<54x20xf32>
    %29 = arith.mulf %23, %28 : vector<54x20xf32>
    %c0_18 = arith.constant 0 : index
    %c0_19 = arith.constant 0 : index
    %30 = vector.load %arg4[%c0_18, %c0_19] : memref<54x20xf32, #tpu.memory_space<vmem>>, vector<54x20xf32>
    tpu.vector_store %arg4[%c0_18, %c0_19], %29 {strides = array<i32>} : memref<54x20xf32, #tpu.memory_space<vmem>>, vector<54x20xf32>,
    return
  }
  func.func @transform_0(%arg0: i32) -> (i32, i32) {
    %c0_i32 = arith.constant 0 : i32
    %c0_i32_0 = arith.constant 0 : i32
    %c0_i32_1 = arith.constant 0 : i32
    return %c0_i32, %c0_i32_0 : i32, i32
  }
  func.func @transform_1(%arg0: i32) -> (i32, i32) {
    %c0_i32 = arith.constant 0 : i32
    %c0_i32_0 = arith.constant 0 : i32
    %c0_i32_1 = arith.constant 0 : i32
    return %c0_i32, %c0_i32_0 : i32, i32
  }
  func.func @transform_2(%arg0: i32) -> (i32, i32) {
    %c0_i32 = arith.constant 0 : i32
    %c0_i32_0 = arith.constant 0 : i32
    %c0_i32_1 = arith.constant 0 : i32
    return %c0_i32, %c0_i32_0 : i32, i32
  }
  func.func @transform_3(%arg0: i32) -> (i32, i32) {
    %c0_i32 = arith.constant 0 : i32
    %c0_i32_0 = arith.constant 0 : i32
    %c0_i32_1 = arith.constant 0 : i32
    return %c0_i32, %c0_i32_0 : i32, i32
  }
}

</mosaic_0001>

<llo_original>
// kernel: conv1x1_gelu.1
$region0: #{conv1x1_gelu.1}
  #allocation0 [shape = 'u32[]', space=smem, size = 0x4, offset = 0x4, fixed_abs, tag = 'smem constant byte address 0x4 - core index']
  #allocation1 [shape = 'u32[144,128]{1,0:T(1,128)}', space=vmem, size = 0x12000, scoped, tag = 'internal scratch']
  %s0 = inlined_call_operand.vmem [shape: f32[21,1645], index: 0, kind: input, shape index: {}]
  %s1 = inlined_call_operand.vmem [shape: f32[54,21], index: 1, kind: input, shape index: {}]
  %s2 = inlined_call_operand.vmem [shape: f32[54,1], index: 2, kind: input, shape index: {}]
  %s3 = inlined_call_operand.vmem [shape: f32[54,20], index: 3, kind: output, shape index: {}]
  %s4 = sld [smem:[#allocation0]]
  $region22: #{conv1x1_gelu.1} parent=0
    _
  %s6 = ssub.s32 1, %s4
  %s7 = scalar_select 0, %s6, %s4
  // Predicated region
  $region2: #{conv1x1_gelu.1} parent=0 // pred_check
    _
  $region3: #{conv1x1_gelu.1} parent=0 // pred_check_branch
    %9 = sbr.rel (0) target = $region5
  $region4: #{conv1x1_gelu.1} parent=0 // pred_region
    _
  $region5: #{conv1x1_gelu.1} parent=0 // pred_fallthru
    _
  // Predicated region
  $region6: #{conv1x1_gelu.1} parent=0 // pred_check
    _
  $region7: #{conv1x1_gelu.1} parent=0 // pred_check_branch
    %11 = sbr.rel (0) target = $region9
  $region8: #{conv1x1_gelu.1} parent=0 // pred_region
    _
  $region9: #{conv1x1_gelu.1} parent=0 // pred_fallthru
    _
  // Predicated region
  $region10: #{conv1x1_gelu.1} parent=0 // pred_check
    _
  $region11: #{conv1x1_gelu.1} parent=0 // pred_check_branch
    %13 = sbr.rel (0) target = $region13
  $region12: #{conv1x1_gelu.1} parent=0 // pred_region
    _
  $region13: #{conv1x1_gelu.1} parent=0 // pred_fallthru
    _
  %v14 = vld [vmem:[%s0] sm:$0xff]
  %v15 = vld [vmem:[%s0 + $0x68] sm:$0xff]
  %v16 = vld [vmem:[%s0 + $0xd0] sm:$0x1f]
  %v17 = vld [vmem:[%s0 + $0x28] sm:$0xff]
  %v18 = vld [vmem:[%s0 + $0x90] sm:$0xff]
  %v19 = vld [vmem:[%s0 + $0xf8] sm:$0x1f]
  %v20 = vld [vmem:[%s0 + $0x48] sm:$0xff]
  %v21 = vld [vmem:[%s0 + $0xb0] sm:$0xff]
  %v22 = vld [vmem:[%s0 + $0x118] sm:$0x1f]
  %26 = vrot.lane.b32.xlu0 %v14, 61
  %v27 = vpop.permute.xlu0 %26
  %28 = vrot.lane.b32.xlu0 %v15, 61
  %v29 = vpop.permute.xlu0 %28
  %30 = vrot.lane.b32.xlu0 %v16, 61
  %v31 = vpop.permute.xlu0 %30
  %35 = vrot.lane.b32.xlu0 %v14, 45
  %v36 = vpop.permute.xlu0 %35
  %37 = vrot.lane.b32.xlu0 %v15, 45
  %v38 = vpop.permute.xlu0 %37
  %39 = vrot.lane.b32.xlu0 %v16, 45
  %v40 = vpop.permute.xlu0 %39
  %47 = vrot.lane.b32.xlu0 %v17, 110
  %v48 = vpop.permute.xlu0 %47
  %49 = vrot.lane.b32.xlu0 %v18, 110
  %v50 = vpop.permute.xlu0 %49
  %51 = vrot.lane.b32.xlu0 %v19, 110
  %v52 = vpop.permute.xlu0 %51
  %56 = vrot.lane.b32.xlu0 %v17, 94
  %v57 = vpop.permute.xlu0 %56
  %58 = vrot.lane.b32.xlu0 %v18, 94
  %v59 = vpop.permute.xlu0 %58
  %60 = vrot.lane.b32.xlu0 %v19, 94
  %v61 = vpop.permute.xlu0 %60
  %68 = vrot.lane.b32.xlu0 %v20, 31
  %v69 = vpop.permute.xlu0 %68
  %70 = vrot.lane.b32.xlu0 %v21, 31
  %v71 = vpop.permute.xlu0 %70
  %72 = vrot.lane.b32.xlu0 %v22, 31
  %v73 = vpop.permute.xlu0 %72
  %77 = vrot.lane.b32.xlu0 %v20, 15
  %v78 = vpop.permute.xlu0 %77
  %79 = vrot.lane.b32.xlu0 %v21, 15
  %v80 = vpop.permute.xlu0 %79
  %81 = vrot.lane.b32.xlu0 %v22, 15
  %v82 = vpop.permute.xlu0 %81
  %vm86 = vcmask 39936
  %v87 = vsel %vm86, 0.0, %v27
  %v88 = vsel %vm86, 0.0, %v29
  %v89 = vsel %vm86, 0.0, %v31
  %vm90 = vcmask 48128
  %v91 = vsel %vm90, %v87, %v36
  %v92 = vsel %vm90, %v88, %v38
  %v93 = vsel %vm90, %v89, %v40
  %vm94 = vcmask 56320
  %v95 = vsel %vm94, %v91, 0.0
  %v96 = vsel %vm94, %v92, 0.0
  %v97 = vsel %vm94, %v93, 0.0
  %vm98 = vcmask 72704
  %v99 = vsel %vm98, %v95, %v48
  %v100 = vsel %vm98, %v96, %v50
  %v101 = vsel %vm98, %v97, %v52
  %vm102 = vcmask 80896
  %v103 = vsel %vm102, %v99, %v57
  %v104 = vsel %vm102, %v100, %v59
  %v105 = vsel %vm102, %v101, %v61
  %vm106 = vcmask 89088
  %v107 = vsel %vm106, %v103, 0.0
  %v108 = vsel %vm106, %v104, 0.0
  %v109 = vsel %vm106, %v105, 0.0
  %vm110 = vcmask 105472
  %v111 = vsel %vm110, %v107, %v69
  %v112 = vsel %vm110, %v108, %v71
  %v113 = vsel %vm110, %v109, %v73
  %vm114 = vcmask 113664
  %v115 = vsel %vm114, %v111, %v78
  %v116 = vsel %vm114, %v112, %v80
  %v117 = vsel %vm114, %v113, %v82
  %vm118 = vcmask 121856
  %v119 = vsel %vm118, %v115, 0.0
  %v120 = vsel %vm118, %v116, 0.0
  %v121 = vsel %vm118, %v117, 0.0
  %v122 = vld [vmem:[%s1] sm:$0xff]
  %v123 = vld [vmem:[%s1 + $0x8] sm:$0xff]
  %v124 = vld [vmem:[%s1 + $0x10] sm:$0xff]
  %v125 = vld [vmem:[%s1 + $0x18] sm:$0xff]
  %v126 = vld [vmem:[%s1 + $0x20] sm:$0xff]
  %v127 = vld [vmem:[%s1 + $0x28] sm:$0xff]
  %v128 = vld [vmem:[%s1 + $0x30] sm:$0x3f]
  %v129 = vld [vmem:[%s2] sm:$0xff]
  %v130 = vld [vmem:[%s2 + $0x8] sm:$0xff]
  %v131 = vld [vmem:[%s2 + $0x10] sm:$0xff]
  %v132 = vld [vmem:[%s2 + $0x18] sm:$0xff]
  %v133 = vld [vmem:[%s2 + $0x20] sm:$0xff]
  %v134 = vld [vmem:[%s2 + $0x28] sm:$0xff]
  %v135 = vld [vmem:[%s2 + $0x30] sm:$0x3f]
  %137 = vset.pattern.permute.xlu0 0
  %138 = vperm.xlu0 %137, %v129
  %v139 = vpop.permute.xlu0 %138
  %142 = vset.pattern.permute.xlu0 0
  %143 = vperm.xlu0 %142, %v130
  %v144 = vpop.permute.xlu0 %143
  %147 = vset.pattern.permute.xlu0 0
  %148 = vperm.xlu0 %147, %v131
  %v149 = vpop.permute.xlu0 %148
  %152 = vset.pattern.permute.xlu0 0
  %153 = vperm.xlu0 %152, %v132
  %v154 = vpop.permute.xlu0 %153
  %157 = vset.pattern.permute.xlu0 0
  %158 = vperm.xlu0 %157, %v133
  %v159 = vpop.permute.xlu0 %158
  %162 = vset.pattern.permute.xlu0 0
  %163 = vperm.xlu0 %162, %v134
  %v164 = vpop.permute.xlu0 %163
  %167 = vset.pattern.permute.xlu0 0
  %168 = vperm.xlu0 %167, %v135
  %v169 = vpop.permute.xlu0 %168
  %vm171 = vcmask 171008
  %v173 = vsel %vm171, %v122, 0
  %v176 = vsel %vm171, %v123, 0
  %v179 = vsel %vm171, %v124, 0
  %v182 = vsel %vm171, %v125, 0
  %v185 = vsel %vm171, %v126, 0
  %v188 = vsel %vm171, %v127, 0
  %v191 = vsel %vm171, %v128, 0
  %vm193 = vcmask 1044480
  %v195 = vsel %vm193, %v121, 0
  %197 = vmatprep.subr.mxu0 0.0
  %198 = vmatpush1.msra.mxu0 %v119
  %199 = vmatprep.subr.mxu0 0.0
  %200 = vmatpush1.msra.mxu0 %v120
  %201 = vmatprep.subr.mxu0 0.0
  %202 = vmatpush1.msra.mxu0 %v195
  %203 = vmatprep.subr.mxu0 0.0
  %204 = vmatpush1.msra.mxu0 0.0
  %205 = vmatprep.subr.mxu0 0.0
  %206 = vmatpush1.msra.mxu0 0.0
  %207 = vmatprep.subr.mxu0 0.0
  %208 = vmatpush1.msra.mxu0 0.0
  %209 = vmatprep.subr.mxu0 0.0
  %210 = vmatpush1.msra.mxu0 0.0
  %211 = vmatprep.subr.mxu0 0.0
  %212 = vmatpush1.msra.mxu0 0.0
  %213 = vmatprep.subr.mxu0 0.0
  %214 = vmatpush1.msra.mxu0 0.0
  %215 = vmatprep.subr.mxu0 0.0
  %216 = vmatpush1.msra.mxu0 0.0
  %217 = vmatprep.subr.mxu0 0.0
  %218 = vmatpush1.msra.mxu0 0.0
  %219 = vmatprep.subr.mxu0 0.0
  %220 = vmatpush1.msra.mxu0 0.0
  %221 = vmatprep.subr.mxu0 0.0
  %222 = vmatpush1.msra.mxu0 0.0
  %223 = vmatprep.subr.mxu0 0.0
  %224 = vmatpush1.msra.mxu0 0.0
  %225 = vmatprep.subr.mxu0 0.0
  %226 = vmatpush1.msra.mxu0 0.0
  %227 = vmatprep.subr.mxu0 0.0
  %228 = vmatpush1.msra.mxu0 0.0
  %229 = vmatprep.subr.mxu0 0.0
  %230 = vmatpush1.msra.mxu0 0.0
  %231 = vmatprep.subr.mxu0 0.0
  %232 = vmatpush1.msra.mxu0 0.0
  %233 = vmatprep.subr.mxu0 0.0
  %234 = vmatpush1.msra.mxu0 0.0
  %235 = vmatprep.subr.mxu0 0.0
  %236 = vmatpush1.msra.mxu0 0.0
  %237 = vmatprep.subr.mxu0 0.0
  %238 = vmatpush1.msra.mxu0 0.0
  %239 = vmatprep.subr.mxu0 0.0
  %240 = vmatpush1.msra.mxu0 0.0
  %241 = vmatprep.subr.mxu0 0.0
  %242 = vmatpush1.msra.mxu0 0.0
  %243 = vmatprep.subr.mxu0 0.0
  %244 = vmatpush1.msra.mxu0 0.0
  %245 = vmatprep.subr.mxu0 0.0
  %246 = vmatpush1.msra.mxu0 0.0
  %247 = vmatprep.subr.mxu0 0.0
  %248 = vmatpush1.msra.mxu0 0.0
  %249 = vmatprep.subr.mxu0 0.0
  %250 = vmatpush1.msra.mxu0 0.0
  %251 = vmatprep.subr.mxu0 0.0
  %252 = vmatpush1.msra.mxu0 0.0
  %253 = vmatprep.subr.mxu0 0.0
  %254 = vmatpush1.msra.mxu0 0.0
  %255 = vmatprep.subr.mxu0 0.0
  %256 = vmatpush1.msra.mxu0 0.0
  %257 = vmatprep.subr.mxu0 0.0
  %258 = vmatpush1.msra.mxu0 0.0
  %259 = vmatprep.subr.mxu0 0.0
  %260 = vmatpush1.msra.mxu0 0.0
  %261 = vmatprep.mubr.f32.mxu0 0.0
  %262 = vmatmul.mubr.f32.gmra.mrb[0].mxu0 %v173
  %v263 = vpop.f32.mrb[0].mxu0
  %v264 = vadd.f32 %v139, %v263
  %v265 = vpop.f32.mrb[0].mxu0
  %266 = vmatprep.mubr.f32.mxu0 0.0
  %267 = vmatmul.mubr.f32.gmra.mrb[0].mxu0 %v176
  %v268 = vpop.f32.mrb[0].mxu0
  %v269 = vadd.f32 %v144, %v268
  %v270 = vpop.f32.mrb[0].mxu0
  %271 = vmatprep.mubr.f32.mxu0 0.0
  %272 = vmatmul.mubr.f32.gmra.mrb[0].mxu0 %v179
  %v273 = vpop.f32.mrb[0].mxu0
  %v274 = vadd.f32 %v149, %v273
  %v275 = vpop.f32.mrb[0].mxu0
  %276 = vmatprep.mubr.f32.mxu0 0.0
  %277 = vmatmul.mubr.f32.gmra.mrb[0].mxu0 %v182
  %v278 = vpop.f32.mrb[0].mxu0
  %v279 = vadd.f32 %v154, %v278
  %v280 = vpop.f32.mrb[0].mxu0
  %281 = vmatprep.mubr.f32.mxu0 0.0
  %282 = vmatmul.mubr.f32.gmra.mrb[0].mxu0 %v185
  %v283 = vpop.f32.mrb[0].mxu0
  %v284 = vadd.f32 %v159, %v283
  %v285 = vpop.f32.mrb[0].mxu0
  %286 = vmatprep.mubr.f32.mxu0 0.0
  %287 = vmatmul.mubr.f32.gmra.mrb[0].mxu0 %v188
  %v288 = vpop.f32.mrb[0].mxu0
  %v289 = vadd.f32 %v164, %v288
  %v290 = vpop.f32.mrb[0].mxu0
  %291 = vmatprep.mubr.f32.mxu0 0.0
  %292 = vmatmul.mubr.f32.gmra.mrb[0].mxu0 %v191
  %v293 = vpop.f32.mrb[0].mxu0
  %v294 = vadd.f32 %v169, %v293
  %v295 = vpop.f32.mrb[0].mxu0
  %296 = vdwg.mxu0
  %v297 = vmul.f32 %v264, %v264
  %v298 = vmul.f32 %v269, %v269
  %v299 = vmul.f32 %v274, %v274
  %v300 = vmul.f32 %v279, %v279
  %v301 = vmul.f32 %v284, %v284
  %v302 = vmul.f32 %v289, %v289
  %v303 = vmul.f32 %v294, %v294
  %v304 = vmul.f32 %v297, 0.044715
  %v305 = vmul.f32 %v298, 0.044715
  %v306 = vmul.f32 %v299, 0.044715
  %v307 = vmul.f32 %v300, 0.044715
  %v308 = vmul.f32 %v301, 0.044715
  %v309 = vmul.f32 %v302, 0.044715
  %v310 = vmul.f32 %v303, 0.044715
  %v311 = vadd.f32 %v304, 1.0
  %v312 = vadd.f32 %v305, 1.0
  %v313 = vadd.f32 %v306, 1.0
  %v314 = vadd.f32 %v307, 1.0
  %v315 = vadd.f32 %v308, 1.0
  %v316 = vadd.f32 %v309, 1.0
  %v317 = vadd.f32 %v310, 1.0
  %v318 = vmul.f32 %v264, %v311
  %v319 = vmul.f32 %v269, %v312
  %v320 = vmul.f32 %v274, %v313
  %v321 = vmul.f32 %v279, %v314
  %v322 = vmul.f32 %v284, %v315
  %v323 = vmul.f32 %v289, %v316
  %v324 = vmul.f32 %v294, %v317
  %v325 = vmul.f32 %v264, 0.5
  %v326 = vmul.f32 %v269, 0.5
  %v327 = vmul.f32 %v274, 0.5
  %v328 = vmul.f32 %v279, 0.5
  %v329 = vmul.f32 %v284, 0.5
  %v330 = vmul.f32 %v289, 0.5
  %v331 = vmul.f32 %v294, 0.5
  %v332 = vmul.f32 %v318, 0.7978846
  %v333 = vmul.f32 %v319, 0.7978846
  %v334 = vmul.f32 %v320, 0.7978846
  %v335 = vmul.f32 %v321, 0.7978846
  %v336 = vmul.f32 %v322, 0.7978846
  %v337 = vmul.f32 %v323, 0.7978846
  %v338 = vmul.f32 %v324, 0.7978846
  %v339 = vtanh.pop %v332
  %v340 = vtanh.pop %v333
  %v341 = vtanh.pop %v334
  %v342 = vtanh.pop %v335
  %v343 = vtanh.pop %v336
  %v344 = vtanh.pop %v337
  %v345 = vtanh.pop %v338
  %v346 = vadd.f32 %v339, 1.0
  %v347 = vadd.f32 %v340, 1.0
  %v348 = vadd.f32 %v341, 1.0
  %v349 = vadd.f32 %v342, 1.0
  %v350 = vadd.f32 %v343, 1.0
  %v351 = vadd.f32 %v344, 1.0
  %v352 = vadd.f32 %v345, 1.0
  %v353 = vmul.f32 %v325, %v346
  %v354 = vmul.f32 %v326, %v347
  %v355 = vmul.f32 %v327, %v348
  %v356 = vmul.f32 %v328, %v349
  %v357 = vmul.f32 %v329, %v350
  %v358 = vmul.f32 %v330, %v351
  %v359 = vmul.f32 %v331, %v352
  %vm360 = vcmask 162816
  %361 = vst.msk [vmem:[%s3] sm:$0xff] %vm360, %v353
  %362 = vst.msk [vmem:[%s3 + $0x8] sm:$0xff] %vm360, %v354
  %363 = vst.msk [vmem:[%s3 + $0x10] sm:$0xff] %vm360, %v355
  %364 = vst.msk [vmem:[%s3 + $0x18] sm:$0xff] %vm360, %v356
  %365 = vst.msk [vmem:[%s3 + $0x20] sm:$0xff] %vm360, %v357
  %366 = vst.msk [vmem:[%s3 + $0x28] sm:$0xff] %vm360, %v358
  %vm367 = vcmask 160768
  %368 = vst.msk [vmem:[%s3 + $0x30] sm:$0x3f] %vm367, %v359
  // Predicated region
  $region14: #{conv1x1_gelu.1} parent=0 // pred_check
    _
  $region15: #{conv1x1_gelu.1} parent=0 // pred_check_branch
    %370 = sbr.rel (0) target = $region17
  $region16: #{conv1x1_gelu.1} parent=0 // pred_region
    _
  $region17: #{conv1x1_gelu.1} parent=0 // pred_fallthru
    _
  // Predicated region
  $region18: #{conv1x1_gelu.1} parent=0 // pred_check
    _
  $region19: #{conv1x1_gelu.1} parent=0 // pred_check_branch
    %372 = sbr.rel (0) target = $region21
  $region20: #{conv1x1_gelu.1} parent=0 // pred_region
    _
  $region21: #{conv1x1_gelu.1} parent=0 // pred_fallthru
    _

</llo_original>
